<compile_context>
chip_gen: v7x
topology: tpu7x:2x2x1
jax: 0.10.0
libtpu: 0.0.40
codegen_flags: <defaults>
</compile_context>

<pallas_src>
import functools

import jax
import jax.numpy as jnp
from jax.experimental import pallas as pl
from jax.experimental.pallas import tpu as pltpu


def _round_up(n, m):
    return ((n + m - 1) // m) * m


def _mlp_kernel(x_ref, w1_ref, b1_ref, w2_ref, b2_ref, w3_ref, b3_ref, o_ref):
    """One batch tile: 3 fused matmuls (bf16 MXU, f32 acc) + bias + ReLU."""
    wdt = w1_ref.dtype
    x = x_ref[...]                                                   # [TB, Dp] bf16

    # Layer 1 + ReLU
    h1 = jnp.dot(x, w1_ref[...],
                 preferred_element_type=jnp.float32)                 # [TB, Hp] f32
    h1 = jnp.maximum(h1 + b1_ref[...], 0.0)

    # Layer 2 + ReLU
    h2 = jnp.dot(h1.astype(wdt), w2_ref[...],
                 preferred_element_type=jnp.float32)                 # [TB, Hp] f32
    h2 = jnp.maximum(h2 + b2_ref[...], 0.0)

    # Layer 3 (no activation)
    out = jnp.dot(h2.astype(wdt), w3_ref[...],
                  preferred_element_type=jnp.float32)                # [TB, Cp] f32
    o_ref[...] = (out + b3_ref[...]).astype(o_ref.dtype)


@functools.partial(jax.jit, static_argnames=("block_batch", "weight_dtype"))
def neural_net_forward(x, params, *, block_batch=256, weight_dtype=jnp.bfloat16):
    """x: [B, input_size] float32. params: dict w1,b1,w2,b2,w3,b3 (W as [in, out])."""
    w1, b1 = params["w1"], params["b1"]
    w2, b2 = params["w2"], params["b2"]
    w3, b3 = params["w3"], params["b3"]

    B, D_in = x.shape
    H = w1.shape[1]
    C = w3.shape[1]

    # Lane-dense padded feature dims (multiples of 128).
    D_p = _round_up(D_in, 128)
    H_p = _round_up(H, 128)
    C_p = _round_up(C, 128)

    # Batch tile: large for pipelining, multiple of 8 sublanes, no bigger than
    # the (sublane-rounded) batch itself.
    TB = min(int(block_batch), _round_up(B, 8))
    TB = _round_up(TB, 8)
    B_p = _round_up(B, TB)

    pad2 = lambda a, r, c: jnp.pad(a, ((0, r - a.shape[0]), (0, c - a.shape[1])))

    # x is cast to the matmul dtype here (fused with the padding copy): the
    # kernel would cast it before the first jnp.dot anyway, so the math is
    # identical, and the kernel's batch-scaled HBM read is halved.
    x_p = pad2(x, B_p, D_p).astype(weight_dtype)
    w1_p = pad2(w1, D_p, H_p).astype(weight_dtype)
    w2_p = pad2(w2, H_p, H_p).astype(weight_dtype)
    w3_p = pad2(w3, H_p, C_p).astype(weight_dtype)
    b1_p = pad2(b1, 1, H_p).astype(jnp.float32)
    b2_p = pad2(b2, 1, H_p).astype(jnp.float32)
    b3_p = pad2(b3, 1, C_p).astype(jnp.float32)

    grid = (B_p // TB,)

    # Weights/biases: constant block index -> DMA'd once, VMEM-resident.
    def resident(a):
        return pl.BlockSpec(a.shape, lambda i: (0, 0))

    wbytes = jnp.dtype(weight_dtype).itemsize
    flops = 2 * B_p * (D_p * H_p + H_p * H_p + H_p * C_p)
    bytes_accessed = (x_p.size * wbytes + B_p * C_p * 4
                      + (w1_p.size + w2_p.size + w3_p.size) * wbytes
                      + (b1_p.size + b2_p.size + b3_p.size) * 4)

    # VMEM budget: double-buffered x/out tiles + resident weights/biases
    # + headroom for the f32 hidden intermediates; capped at 64 MiB (v7x).
    vmem_need = (2 * (TB * D_p * wbytes + TB * C_p * 4)
                 + (w1_p.size + w2_p.size + w3_p.size) * wbytes
                 + (b1_p.size + b2_p.size + b3_p.size) * 4
                 + 4 * TB * H_p * 4)
    vmem_limit = int(min(max(2 * vmem_need, 32 * 1024 * 1024), 64 * 1024 * 1024))

    out_p = pl.pallas_call(
        _mlp_kernel,
        out_shape=jax.ShapeDtypeStruct((B_p, C_p), jnp.float32),
        grid=grid,
        in_specs=[
            pl.BlockSpec((TB, D_p), lambda i: (i, 0)),   # x: tiled over batch
            resident(w1_p), resident(b1_p),
            resident(w2_p), resident(b2_p),
            resident(w3_p), resident(b3_p),
        ],
        out_specs=pl.BlockSpec((TB, C_p), lambda i: (i, 0)),
        compiler_params=pltpu.CompilerParams(
            dimension_semantics=("parallel",),           # batch axis -> megacore
            vmem_limit_bytes=vmem_limit,
        ),
        cost_estimate=pl.CostEstimate(
            flops=int(flops), transcendentals=0, bytes_accessed=int(bytes_accessed)),
    )(x_p, w1_p, b1_p, w2_p, b2_p, w3_p, b3_p)

    return out_p[:B, :C]


def init_params(key, input_size, hidden_size, num_classes):
    """Deterministic init matching nn.Linear's U(-1/sqrt(fan_in), 1/sqrt(fan_in)).

    Weights stored as [in_features, out_features] so the kernel computes
    y = x @ W + b (transposed relative to PyTorch's [out, in] layout).
    """
    ks = jax.random.split(key, 6)

    def linear(kw, kb, fan_in, fan_out):
        bound = 1.0 / jnp.sqrt(jnp.float32(fan_in))
        w = jax.random.uniform(kw, (fan_in, fan_out), jnp.float32, -bound, bound)
        b = jax.random.uniform(kb, (1, fan_out), jnp.float32, -bound, bound)
        return w, b

    w1, b1 = linear(ks[0], ks[1], input_size, hidden_size)
    w2, b2 = linear(ks[2], ks[3], hidden_size, hidden_size)
    w3, b3 = linear(ks[4], ks[5], hidden_size, num_classes)
    return dict(w1=w1, b1=b1, w2=w2, b2=b2, w3=w3, b3=b3)


def reference_forward(x, p, weight_dtype=jnp.bfloat16):
    """Pure-JAX reference mirroring the kernel's bf16-weight / f32-accumulate math."""
    def lin(a, w, b):
        return jnp.dot(a.astype(weight_dtype), w.astype(weight_dtype),
                       preferred_element_type=jnp.float32) + b
    h1 = jnp.maximum(lin(x, p["w1"], p["b1"]), 0.0)
    h2 = jnp.maximum(lin(h1, p["w2"], p["b2"]), 0.0)
    return lin(h2, p["w3"], p["b3"])


if __name__ == "__main__":
    key = jax.random.PRNGKey(0)
    k_x, k_p = jax.random.split(key)

    # Small example shapes consistent with the module.
    batch, input_size, hidden_size, num_classes = 40, 32, 64, 16
    x = jax.random.normal(k_x, (batch, input_size), jnp.float32)
    params = init_params(k_p, input_size, hidden_size, num_classes)

    # block_batch=16 exercises a multi-step batch grid (+ padded last tile) even
    # at this small size; production use would leave the default of 256.
    out = neural_net_forward(x, params, block_batch=16)
    out = jax.block_until_ready(out)

    ref = reference_forward(x, params)
    assert out.shape == (batch, num_classes)
    assert jnp.allclose(out, ref, atol=2e-3, rtol=2e-3), \
        float(jnp.max(jnp.abs(out - ref)))

    print("KERNEL_OK")
</pallas_src>

<mosaic_0001>
module attributes {stable_mosaic.version = 11 : i64} {
  func.func @_mlp_kernel(%arg0: i32, %arg1: memref<16x128xbf16, #tpu.memory_space<vmem>>, %arg2: memref<128x128xbf16, #tpu.memory_space<vmem>>, %arg3: memref<1x128xf32, #tpu.memory_space<vmem>>, %arg4: memref<128x128xbf16, #tpu.memory_space<vmem>>, %arg5: memref<1x128xf32, #tpu.memory_space<vmem>>, %arg6: memref<128x128xbf16, #tpu.memory_space<vmem>>, %arg7: memref<1x128xf32, #tpu.memory_space<vmem>>, %arg8: memref<16x128xf32, #tpu.memory_space<vmem>>) attributes {dimension_semantics = [#tpu.dimension_semantics<parallel>], iteration_bounds = array<i64: 3>, scalar_prefetch = 0 : i64, scratch_operands = 0 : i64, tpu.core_type = #tpu.core_type<tc>, window_params = [{transform_indices = @transform_0, window_bounds = array<i64: 16, 128>}, {pipeline_mode = #tpu.pipeline_mode<synchronous>, transform_indices = @transform_1, window_bounds = array<i64: 128, 128>}, {pipeline_mode = #tpu.pipeline_mode<synchronous>, transform_indices = @transform_2, window_bounds = array<i64: 1, 128>}, {pipeline_mode = #tpu.pipeline_mode<synchronous>, transform_indices = @transform_3, window_bounds = array<i64: 128, 128>}, {pipeline_mode = #tpu.pipeline_mode<synchronous>, transform_indices = @transform_4, window_bounds = array<i64: 1, 128>}, {pipeline_mode = #tpu.pipeline_mode<synchronous>, transform_indices = @transform_5, window_bounds = array<i64: 128, 128>}, {pipeline_mode = #tpu.pipeline_mode<synchronous>, transform_indices = @transform_6, window_bounds = array<i64: 1, 128>}, {transform_indices = @transform_7, window_bounds = array<i64: 16, 128>}]} {
    %c0 = arith.constant 0 : index
    %c0_0 = arith.constant 0 : index
    %0 = vector.load %arg1[%c0, %c0_0] : memref<16x128xbf16, #tpu.memory_space<vmem>>, vector<16x128xbf16>
    %c0_1 = arith.constant 0 : index
    %c0_2 = arith.constant 0 : index
    %1 = vector.load %arg2[%c0_1, %c0_2] : memref<128x128xbf16, #tpu.memory_space<vmem>>, vector<128x128xbf16>
    %cst = arith.constant dense<0.000000e+00> : vector<16x128xf32>
    %2 = tpu.matmul %0, %1, %cst {dimension_numbers = #tpu.dot_dimension_numbers<[1], [0], [0], [1], [0, 0, 1, 1], [], []>} : vector<16x128xbf16>, vector<128x128xbf16>, vector<16x128xf32> -> vector<16x128xf32>
    %c0_3 = arith.constant 0 : index
    %c0_4 = arith.constant 0 : index
    %3 = vector.load %arg3[%c0_3, %c0_4] : memref<1x128xf32, #tpu.memory_space<vmem>>, vector<1x128xf32>
    %4 = vector.broadcast %3 : vector<1x128xf32> to vector<16x128xf32>
    %5 = arith.addf %2, %4 : vector<16x128xf32>
    %cst_5 = arith.constant 0.000000e+00 : f32
    %6 = vector.broadcast %cst_5 : f32 to vector<16x128xf32>
    %7 = arith.maximumf %5, %6 : vector<16x128xf32>
    %8 = arith.truncf %7 : vector<16x128xf32> to vector<16x128xbf16>
    %c0_6 = arith.constant 0 : index
    %c0_7 = arith.constant 0 : index
    %9 = vector.load %arg4[%c0_6, %c0_7] : memref<128x128xbf16, #tpu.memory_space<vmem>>, vector<128x128xbf16>
    %cst_8 = arith.constant dense<0.000000e+00> : vector<16x128xf32>
    %10 = tpu.matmul %8, %9, %cst_8 {dimension_numbers = #tpu.dot_dimension_numbers<[1], [0], [0], [1], [0, 0, 1, 1], [], []>} : vector<16x128xbf16>, vector<128x128xbf16>, vector<16x128xf32> -> vector<16x128xf32>
    %c0_9 = arith.constant 0 : index
    %c0_10 = arith.constant 0 : index
    %11 = vector.load %arg5[%c0_9, %c0_10] : memref<1x128xf32, #tpu.memory_space<vmem>>, vector<1x128xf32>
    %12 = vector.broadcast %11 : vector<1x128xf32> to vector<16x128xf32>
    %13 = arith.addf %10, %12 : vector<16x128xf32>
    %cst_11 = arith.constant 0.000000e+00 : f32
    %14 = vector.broadcast %cst_11 : f32 to vector<16x128xf32>
    %15 = arith.maximumf %13, %14 : vector<16x128xf32>
    %16 = arith.truncf %15 : vector<16x128xf32> to vector<16x128xbf16>
    %c0_12 = arith.constant 0 : index
    %c0_13 = arith.constant 0 : index
    %17 = vector.load %arg6[%c0_12, %c0_13] : memref<128x128xbf16, #tpu.memory_space<vmem>>, vector<128x128xbf16>
    %cst_14 = arith.constant dense<0.000000e+00> : vector<16x128xf32>
    %18 = tpu.matmul %16, %17, %cst_14 {dimension_numbers = #tpu.dot_dimension_numbers<[1], [0], [0], [1], [0, 0, 1, 1], [], []>} : vector<16x128xbf16>, vector<128x128xbf16>, vector<16x128xf32> -> vector<16x128xf32>
    %c0_15 = arith.constant 0 : index
    %c0_16 = arith.constant 0 : index
    %19 = vector.load %arg7[%c0_15, %c0_16] : memref<1x128xf32, #tpu.memory_space<vmem>>, vector<1x128xf32>
    %20 = vector.broadcast %19 : vector<1x128xf32> to vector<16x128xf32>
    %21 = arith.addf %18, %20 : vector<16x128xf32>
    %c0_17 = arith.constant 0 : index
    %c0_18 = arith.constant 0 : index
    %22 = vector.load %arg8[%c0_17, %c0_18] : memref<16x128xf32, #tpu.memory_space<vmem>>, vector<16x128xf32>
    tpu.vector_store %arg8[%c0_17, %c0_18], %21 {strides = array<i32>} : memref<16x128xf32, #tpu.memory_space<vmem>>, vector<16x128xf32>,
    return
  }
  func.func @transform_0(%arg0: i32) -> (i32, i32) {
    %c0_i32 = arith.constant 0 : i32
    %c0_i32_0 = arith.constant 0 : i32
    return %arg0, %c0_i32 : i32, i32
  }
  func.func @transform_1(%arg0: i32) -> (i32, i32) {
    %c0_i32 = arith.constant 0 : i32
    %c0_i32_0 = arith.constant 0 : i32
    %c0_i32_1 = arith.constant 0 : i32
    return %c0_i32, %c0_i32_0 : i32, i32
  }
  func.func @transform_2(%arg0: i32) -> (i32, i32) {
    %c0_i32 = arith.constant 0 : i32
    %c0_i32_0 = arith.constant 0 : i32
    %c0_i32_1 = arith.constant 0 : i32
    return %c0_i32, %c0_i32_0 : i32, i32
  }
  func.func @transform_3(%arg0: i32) -> (i32, i32) {
    %c0_i32 = arith.constant 0 : i32
    %c0_i32_0 = arith.constant 0 : i32
    %c0_i32_1 = arith.constant 0 : i32
    return %c0_i32, %c0_i32_0 : i32, i32
  }
  func.func @transform_4(%arg0: i32) -> (i32, i32) {
    %c0_i32 = arith.constant 0 : i32
    %c0_i32_0 = arith.constant 0 : i32
    %c0_i32_1 = arith.constant 0 : i32
    return %c0_i32, %c0_i32_0 : i32, i32
  }
  func.func @transform_5(%arg0: i32) -> (i32, i32) {
    %c0_i32 = arith.constant 0 : i32
    %c0_i32_0 = arith.constant 0 : i32
    %c0_i32_1 = arith.constant 0 : i32
    return %c0_i32, %c0_i32_0 : i32, i32
  }
  func.func @transform_6(%arg0: i32) -> (i32, i32) {
    %c0_i32 = arith.constant 0 : i32
    %c0_i32_0 = arith.constant 0 : i32
    %c0_i32_1 = arith.constant 0 : i32
    return %c0_i32, %c0_i32_0 : i32, i32
  }
  func.func @transform_7(%arg0: i32) -> (i32, i32) {
    %c0_i32 = arith.constant 0 : i32
    %c0_i32_0 = arith.constant 0 : i32
    return %arg0, %c0_i32 : i32, i32
  }
}

</mosaic_0001>

<llo_original>
// kernel: neural_net_forward.1
$region0: #{neural_net_forward.1}
  #allocation0 [shape = 'u32[]', space=smem, size = 0x4, offset = 0x4, fixed_abs, tag = 'smem constant byte address 0x4 - core index']
  #allocation1 [shape = 'u32[144,128]{1,0:T(1,128)}', space=vmem, size = 0x12000, scoped, tag = 'internal scratch']
  %s0 = inlined_call_operand.vmem [shape: bf16[48,128], index: 0, kind: input, shape index: {}]
  %s1 = inlined_call_operand.vmem [shape: bf16[128,128], index: 1, kind: input, shape index: {}]
  %s2 = inlined_call_operand.vmem [shape: f32[1,128], index: 2, kind: input, shape index: {}]
  %s3 = inlined_call_operand.vmem [shape: bf16[128,128], index: 3, kind: input, shape index: {}]
  %s4 = inlined_call_operand.vmem [shape: f32[1,128], index: 4, kind: input, shape index: {}]
  %s5 = inlined_call_operand.vmem [shape: bf16[128,128], index: 5, kind: input, shape index: {}]
  %s6 = inlined_call_operand.vmem [shape: f32[1,128], index: 6, kind: input, shape index: {}]
  %s7 = inlined_call_operand.vmem [shape: f32[48,128], index: 7, kind: output, shape index: {}]
  %s8 = sld [smem:[#allocation0]]
  $region61: #{neural_net_forward.1} parent=0
    _
  %s10 = ssub.s32 1, %s8
  %s11 = scalar_select 0, %s10, %s8
  loop: start=0, step=1, limit=5
  $region2: #{neural_net_forward.1} parent=0 // loop_pre_header
    _
  $region3: #{neural_net_forward.1} parent=0 // loop_header
    %s13 = sphi 0, %s17
    %p14 = scmp.ge.s32.totalorder %s13, 5
    %s23 = sphi 0, %s25
    %s26 = sphi 0, %s23
    %s27 = sphi 0, %s26
    %s43 = sphi 0, %s27
    %s47 = sphi 0, %s47
    %s49 = sphi 0, %s47
    %s50 = sphi 0, %s49
    %s64 = sphi 0, %s50
    %s68 = sphi 0, %s68
    %s70 = sphi 0, %s68
    %s71 = sphi 0, %s70
    %s85 = sphi 0, %s71
    %s89 = sphi 0, %s89
    %s91 = sphi 0, %s89
    %s92 = sphi 0, %s91
    %s106 = sphi 0, %s92
    %s110 = sphi 0, %s110
    %s112 = sphi 0, %s110
    %s113 = sphi 0, %s112
    %s127 = sphi 0, %s113
    %s131 = sphi 0, %s131
    %s133 = sphi 0, %s131
    %s134 = sphi 0, %s133
    %s148 = sphi 0, %s134
    %s152 = sphi 0, %s152
    %s154 = sphi 0, %s152
    %s155 = sphi 0, %s154
    %s169 = sphi 0, %s155
    %s175 = sphi 0, %s177
    %s178 = sphi 0, %s175
    %s179 = sphi 0, %s178
    %s195 = sphi 0, %s179
  $region4: #{neural_net_forward.1} parent=0 // loop_header_branch
    %16 = sbr.rel (%p14) target = $region8
  $region5: #{neural_net_forward.1} parent=0 // loop_body
    %s18 = ssub.s32 %s13, 1
    %s19 = ssub.s32 %s13, 2
    %s20 = sadd.s32 %s13, 1
    %s21 = ssub.s32 %s13, %s20
    %p22 = scmp.eq.s32.totalorder %s21, 0
    %s24 = sadd.s32 %s23, 1
    %s25 = scalar_select %p22, %s23, %s24
    %p28 = pneg %p22
    %p29 = scmp.eq.s32.totalorder %s13, 2
    %p30 = por %p28, %p29
    %p31 = scmp.ne.s32.totalorder %s23, %s26
    %p32 = scmp.eq.s32.totalorder %s13, 0
    %p33 = por %p31, %p32
    %p34 = scmp.ne.s32.totalorder %s23, %s26
    %p35 = scmp.eq.s32.totalorder %s18, 2
    %p36 = por %p34, %p35
    %p37 = scmp.ne.s32.totalorder %s26, %s27
    %p38 = scmp.eq.s32.totalorder %s18, 0
    %p39 = por %p37, %p38
    %p40 = scmp.ne.s32.totalorder %s26, %s27
    %p41 = scmp.eq.s32.totalorder %s19, 2
    %p42 = por %p40, %p41
    %p44 = scmp.ne.s32.totalorder %s27, %s43
    %p45 = scmp.eq.s32.totalorder %s19, 0
    %p46 = por %p44, %p45
    %s48 = sadd.s32 %s47, 1
    %p51 = scmp.eq.s32.totalorder %s13, 2
    %p52 = scmp.ne.s32.totalorder %s47, %s49
    %p53 = scmp.eq.s32.totalorder %s13, 0
    %p54 = por %p52, %p53
    %p55 = scmp.ne.s32.totalorder %s47, %s49
    %p56 = scmp.eq.s32.totalorder %s18, 2
    %p57 = por %p55, %p56
    %p58 = scmp.ne.s32.totalorder %s49, %s50
    %p59 = scmp.eq.s32.totalorder %s18, 0
    %p60 = por %p58, %p59
    %p61 = scmp.ne.s32.totalorder %s49, %s50
    %p62 = scmp.eq.s32.totalorder %s19, 2
    %p63 = por %p61, %p62
    %p65 = scmp.ne.s32.totalorder %s50, %s64
    %p66 = scmp.eq.s32.totalorder %s19, 0
    %p67 = por %p65, %p66
    %s69 = sadd.s32 %s68, 1
    %p72 = scmp.eq.s32.totalorder %s13, 2
    %p73 = scmp.ne.s32.totalorder %s68, %s70
    %p74 = scmp.eq.s32.totalorder %s13, 0
    %p75 = por %p73, %p74
    %p76 = scmp.ne.s32.totalorder %s68, %s70
    %p77 = scmp.eq.s32.totalorder %s18, 2
    %p78 = por %p76, %p77
    %p79 = scmp.ne.s32.totalorder %s70, %s71
    %p80 = scmp.eq.s32.totalorder %s18, 0
    %p81 = por %p79, %p80
    %p82 = scmp.ne.s32.totalorder %s70, %s71
    %p83 = scmp.eq.s32.totalorder %s19, 2
    %p84 = por %p82, %p83
    %p86 = scmp.ne.s32.totalorder %s71, %s85
    %p87 = scmp.eq.s32.totalorder %s19, 0
    %p88 = por %p86, %p87
    %s90 = sadd.s32 %s89, 1
    %p93 = scmp.eq.s32.totalorder %s13, 2
    %p94 = scmp.ne.s32.totalorder %s89, %s91
    %p95 = scmp.eq.s32.totalorder %s13, 0
    %p96 = por %p94, %p95
    %p97 = scmp.ne.s32.totalorder %s89, %s91
    %p98 = scmp.eq.s32.totalorder %s18, 2
    %p99 = por %p97, %p98
    %p100 = scmp.ne.s32.totalorder %s91, %s92
    %p101 = scmp.eq.s32.totalorder %s18, 0
    %p102 = por %p100, %p101
    %p103 = scmp.ne.s32.totalorder %s91, %s92
    %p104 = scmp.eq.s32.totalorder %s19, 2
    %p105 = por %p103, %p104
    %p107 = scmp.ne.s32.totalorder %s92, %s106
    %p108 = scmp.eq.s32.totalorder %s19, 0
    %p109 = por %p107, %p108
    %s111 = sadd.s32 %s110, 1
    %p114 = scmp.eq.s32.totalorder %s13, 2
    %p115 = scmp.ne.s32.totalorder %s110, %s112
    %p116 = scmp.eq.s32.totalorder %s13, 0
    %p117 = por %p115, %p116
    %p118 = scmp.ne.s32.totalorder %s110, %s112
    %p119 = scmp.eq.s32.totalorder %s18, 2
    %p120 = por %p118, %p119
    %p121 = scmp.ne.s32.totalorder %s112, %s113
    %p122 = scmp.eq.s32.totalorder %s18, 0
    %p123 = por %p121, %p122
    %p124 = scmp.ne.s32.totalorder %s112, %s113
    %p125 = scmp.eq.s32.totalorder %s19, 2
    %p126 = por %p124, %p125
    %p128 = scmp.ne.s32.totalorder %s113, %s127
    %p129 = scmp.eq.s32.totalorder %s19, 0
    %p130 = por %p128, %p129
    %s132 = sadd.s32 %s131, 1
    %p135 = scmp.eq.s32.totalorder %s13, 2
    %p136 = scmp.ne.s32.totalorder %s131, %s133
    %p137 = scmp.eq.s32.totalorder %s13, 0
    %p138 = por %p136, %p137
    %p139 = scmp.ne.s32.totalorder %s131, %s133
    %p140 = scmp.eq.s32.totalorder %s18, 2
    %p141 = por %p139, %p140
    %p142 = scmp.ne.s32.totalorder %s133, %s134
    %p143 = scmp.eq.s32.totalorder %s18, 0
    %p144 = por %p142, %p143
    %p145 = scmp.ne.s32.totalorder %s133, %s134
    %p146 = scmp.eq.s32.totalorder %s19, 2
    %p147 = por %p145, %p146
    %p149 = scmp.ne.s32.totalorder %s134, %s148
    %p150 = scmp.eq.s32.totalorder %s19, 0
    %p151 = por %p149, %p150
    %s153 = sadd.s32 %s152, 1
    %p156 = scmp.eq.s32.totalorder %s13, 2
    %p157 = scmp.ne.s32.totalorder %s152, %s154
    %p158 = scmp.eq.s32.totalorder %s13, 0
    %p159 = por %p157, %p158
    %p160 = scmp.ne.s32.totalorder %s152, %s154
    %p161 = scmp.eq.s32.totalorder %s18, 2
    %p162 = por %p160, %p161
    %p163 = scmp.ne.s32.totalorder %s154, %s155
    %p164 = scmp.eq.s32.totalorder %s18, 0
    %p165 = por %p163, %p164
    %p166 = scmp.ne.s32.totalorder %s154, %s155
    %p167 = scmp.eq.s32.totalorder %s19, 2
    %p168 = por %p166, %p167
    %p170 = scmp.ne.s32.totalorder %s155, %s169
    %p171 = scmp.eq.s32.totalorder %s19, 0
    %p172 = por %p170, %p171
    %s173 = ssub.s32 %s13, %s20
    %p174 = scmp.eq.s32.totalorder %s173, 0
    %s176 = sadd.s32 %s175, 1
    %s177 = scalar_select %p174, %s175, %s176
    %p180 = pneg %p174
    %p181 = scmp.eq.s32.totalorder %s13, 2
    %p182 = por %p180, %p181
    %p183 = scmp.ne.s32.totalorder %s175, %s178
    %p184 = scmp.eq.s32.totalorder %s13, 0
    %p185 = por %p183, %p184
    %p186 = scmp.ne.s32.totalorder %s175, %s178
    %p187 = scmp.eq.s32.totalorder %s18, 2
    %p188 = por %p186, %p187
    %p189 = scmp.ne.s32.totalorder %s178, %s179
    %p190 = scmp.eq.s32.totalorder %s18, 0
    %p191 = por %p189, %p190
    %p192 = scmp.ne.s32.totalorder %s178, %s179
    %p193 = scmp.eq.s32.totalorder %s19, 2
    %p194 = por %p192, %p193
    %p196 = scmp.ne.s32.totalorder %s179, %s195
    %p197 = scmp.eq.s32.totalorder %s19, 0
    %p198 = por %p196, %p197
    %p199 = scmp.le.s32.totalorder 1, %s13
    %p200 = scmp.lt.s32.totalorder %s13, 4
    %p201 = pnand %p199, %p200
    %p202 = pneg %p201
    // Predicated region
    $region9: #{neural_net_forward.1} parent=5 // pred_check
      _
    $region10: #{neural_net_forward.1} parent=5 // pred_check_branch
      %204 = sbr.rel (%p201) target = $region12
    $region11: #{neural_net_forward.1} parent=5 // pred_region
      %s205 = ssub.s32 %s13, 1
      // Predicated region
      $region13: #{neural_net_forward.1} parent=11 // pred_check
        %p206 = pneg %p60
      $region14: #{neural_net_forward.1} parent=11 // pred_check_branch
        %208 = sbr.rel (%p206) target = $region16
      $region15: #{neural_net_forward.1} parent=11 // pred_region
        _
      $region16: #{neural_net_forward.1} parent=11 // pred_fallthru
        _
      // Predicated region
      $region17: #{neural_net_forward.1} parent=11 // pred_check
        %p209 = pneg %p81
      $region18: #{neural_net_forward.1} parent=11 // pred_check_branch
        %211 = sbr.rel (%p209) target = $region20
      $region19: #{neural_net_forward.1} parent=11 // pred_region
        _
      $region20: #{neural_net_forward.1} parent=11 // pred_fallthru
        _
      // Predicated region
      $region21: #{neural_net_forward.1} parent=11 // pred_check
        %p212 = pneg %p102
      $region22: #{neural_net_forward.1} parent=11 // pred_check_branch
        %214 = sbr.rel (%p212) target = $region24
      $region23: #{neural_net_forward.1} parent=11 // pred_region
        _
      $region24: #{neural_net_forward.1} parent=11 // pred_fallthru
        _
      // Predicated region
      $region25: #{neural_net_forward.1} parent=11 // pred_check
        %p215 = pneg %p123
      $region26: #{neural_net_forward.1} parent=11 // pred_check_branch
        %217 = sbr.rel (%p215) target = $region28
      $region27: #{neural_net_forward.1} parent=11 // pred_region
        _
      $region28: #{neural_net_forward.1} parent=11 // pred_fallthru
        _
      // Predicated region
      $region29: #{neural_net_forward.1} parent=11 // pred_check
        %p218 = pneg %p144
      $region30: #{neural_net_forward.1} parent=11 // pred_check_branch
        %220 = sbr.rel (%p218) target = $region32
      $region31: #{neural_net_forward.1} parent=11 // pred_region
        _
      $region32: #{neural_net_forward.1} parent=11 // pred_fallthru
        _
      // Predicated region
      $region33: #{neural_net_forward.1} parent=11 // pred_check
        %p221 = pneg %p165
      $region34: #{neural_net_forward.1} parent=11 // pred_check_branch
        %223 = sbr.rel (%p221) target = $region36
      $region35: #{neural_net_forward.1} parent=11 // pred_region
        _
      $region36: #{neural_net_forward.1} parent=11 // pred_fallthru
        _
    $region12: #{neural_net_forward.1} parent=5 // pred_fallthru
      _
    %p224 = scmp.lt.s32.totalorder %s13, 3
    // Predicated region
    $region37: #{neural_net_forward.1} parent=5 // pred_check
      %p225 = pneg %p224
    $region38: #{neural_net_forward.1} parent=5 // pred_check_branch
      %227 = sbr.rel (%p225) target = $region40
    $region39: #{neural_net_forward.1} parent=5 // pred_region
      // Predicated region
      $region41: #{neural_net_forward.1} parent=39 // pred_check
        %p228 = pneg %p33
      $region42: #{neural_net_forward.1} parent=39 // pred_check_branch
        %230 = sbr.rel (%p228) target = $region44
      $region43: #{neural_net_forward.1} parent=39 // pred_region
        %s231 = smul.u32 2, %s13
        %p232 = scmp.lt.s32.totalorder %s231, 5
        %s233 = scalar_select %p232, %s231, 5
        %s234 = smul.addr %s233, 4
        %s235 = scalar_lea.vmem %s0, %s234
        %s236 = smul.u32 2, %s13
      $region44: #{neural_net_forward.1} parent=39 // pred_fallthru
        _
    $region40: #{neural_net_forward.1} parent=5 // pred_fallthru
      _
    %p237 = scmp.le.s32.totalorder 1, %s13
    %p238 = scmp.lt.s32.totalorder %s13, 4
    %p239 = pnand %p237, %p238
    %p240 = pneg %p239
    // Predicated region
    $region45: #{neural_net_forward.1} parent=5 // pred_check
      _
    $region46: #{neural_net_forward.1} parent=5 // pred_check_branch
      %242 = sbr.rel (%p239) target = $region48
    $region47: #{neural_net_forward.1} parent=5 // pred_region
      %s243 = ssub.s32 %s13, 1
      %s244 = smul.u32 2, %s18
      %p245 = scmp.lt.s32.totalorder %s244, 5
      %s246 = scalar_select %p245, %s244, 5
      %s247 = smul.addr %s246, 4
      %s248 = scalar_lea.vmem %s0, %s247
      %p249 = pneg %p39
      %p250 = pneg %p36
      %p251 = pneg %p60
      %p252 = pneg %p57
      %p253 = pneg %p81
      %p254 = pneg %p78
      %p255 = pneg %p102
      %p256 = pneg %p99
      %p257 = pneg %p123
      %p258 = pneg %p120
      %p259 = pneg %p144
      %p260 = pneg %p141
      %p261 = pneg %p165
      %p262 = pneg %p162
      %p263 = pneg %p191
      %p264 = pneg %p188
      %s265 = smul.u32 2, %s18
      %p266 = scmp.lt.s32.totalorder %s265, 5
      %s267 = scalar_select %p266, %s265, 5
      %s268 = smul.addr %s267, 8
      %s269 = scalar_lea.vmem %s7, %s268
      %s270 = smul.u32 2, %s18
      %p271 = scmp.lt.s32.totalorder %s270, 5
      %s272 = scalar_select %p271, %s270, 5
      %s273 = smul.addr %s272, 4
      %s274 = scalar_lea.vmem %s0, %s273
      %s275 = smul.u32 2, %s18
      %s276 = smul.u32 2, %s18
      %p277 = scmp.lt.s32.totalorder %s276, 5
      %s278 = scalar_select %p277, %s276, 5
      %s279 = smul.addr %s278, 8
      %s280 = scalar_lea.vmem %s7, %s279
      %s281 = smul.u32 2, %s18
      %v283 = vld [vmem:[%s274] sm:$0xf]
      %v284 = vld [vmem:[%s274 + $0x4] sm:$0xf]
      %v285 = vld [vmem:[%s1] sm:$0xf]
      %v286 = vld [vmem:[%s1 + $0x4] sm:$0xf]
      %v287 = vld [vmem:[%s1 + $0x8] sm:$0xf]
      %v288 = vld [vmem:[%s1 + $0xc] sm:$0xf]
      %v289 = vld [vmem:[%s1 + $0x10] sm:$0xf]
      %v290 = vld [vmem:[%s1 + $0x14] sm:$0xf]
      %v291 = vld [vmem:[%s1 + $0x18] sm:$0xf]
      %v292 = vld [vmem:[%s1 + $0x1c] sm:$0xf]
      %v293 = vld [vmem:[%s1 + $0x20] sm:$0xf]
      %v294 = vld [vmem:[%s1 + $0x24] sm:$0xf]
      %v295 = vld [vmem:[%s1 + $0x28] sm:$0xf]
      %v296 = vld [vmem:[%s1 + $0x2c] sm:$0xf]
      %v297 = vld [vmem:[%s1 + $0x30] sm:$0xf]
      %v298 = vld [vmem:[%s1 + $0x34] sm:$0xf]
      %v299 = vld [vmem:[%s1 + $0x38] sm:$0xf]
      %v300 = vld [vmem:[%s1 + $0x3c] sm:$0xf]
      %v301 = vld [vmem:[%s2] sm:$0x1]
      %v303 = vlaneseq
      %v304 = vshrl.u32 %v303, 7
      %v305 = vsub.s32 0, %v304
      %v306 = vrot.slane %v301, %v305
      %v310 = vunpack.c.l.b16 %v283
      %v311 = vunpack.c.l.b16 %v284
      %v312 = vpack.c.b16 %v311, %v310
      %v330 = vunpack.c.l.b16 %v285
      %v331 = vunpack.c.l.b16 %v286
      %v332 = vunpack.c.l.b16 %v287
      %v333 = vunpack.c.l.b16 %v288
      %v334 = vunpack.c.l.b16 %v289
      %v335 = vunpack.c.l.b16 %v290
      %v336 = vunpack.c.l.b16 %v291
      %v337 = vunpack.c.l.b16 %v292
      %v338 = vunpack.c.l.b16 %v293
      %v339 = vunpack.c.l.b16 %v294
      %v340 = vunpack.c.l.b16 %v295
      %v341 = vunpack.c.l.b16 %v296
      %v342 = vunpack.c.l.b16 %v297
      %v343 = vunpack.c.l.b16 %v298
      %v344 = vunpack.c.l.b16 %v299
      %v345 = vunpack.c.l.b16 %v300
      %v346 = vpack.c.b16 %v331, %v330
      %v347 = vpack.c.b16 %v333, %v332
      %v348 = vpack.c.b16 %v335, %v334
      %v349 = vpack.c.b16 %v337, %v336
      %v350 = vpack.c.b16 %v339, %v338
      %v351 = vpack.c.b16 %v341, %v340
      %v352 = vpack.c.b16 %v343, %v342
      %v353 = vpack.c.b16 %v345, %v344
      %362 = vmatprep.subr.bf16.mxu0 0
      %363 = vmatpush1.bf16.msra.mxu0 %v346
      %364 = vmatprep.subr.bf16.mxu0 0
      %365 = vmatpush1.bf16.msra.mxu0 %v347
      %366 = vmatprep.subr.bf16.mxu0 0
      %367 = vmatpush1.bf16.msra.mxu0 %v348
      %368 = vmatprep.subr.bf16.mxu0 0
      %369 = vmatpush1.bf16.msra.mxu0 %v349
      %370 = vmatprep.subr.bf16.mxu0 0
      %371 = vmatpush1.bf16.msra.mxu0 %v350
      %372 = vmatprep.subr.bf16.mxu0 0
      %373 = vmatpush1.bf16.msra.mxu0 %v351
      %374 = vmatprep.subr.bf16.mxu0 0
      %375 = vmatpush1.bf16.msra.mxu0 %v352
      %376 = vmatprep.subr.bf16.mxu0 0
      %377 = vmatpush1.bf16.msra.mxu0 %v353
      %378 = vmatprep.subr.bf16.mxu0 0
      %379 = vmatpush1.bf16.msra.mxu0 0
      %380 = vmatprep.subr.bf16.mxu0 0
      %381 = vmatpush1.bf16.msra.mxu0 0
      %382 = vmatprep.subr.bf16.mxu0 0
      %383 = vmatpush1.bf16.msra.mxu0 0
      %384 = vmatprep.subr.bf16.mxu0 0
      %385 = vmatpush1.bf16.msra.mxu0 0
      %386 = vmatprep.subr.bf16.mxu0 0
      %387 = vmatpush1.bf16.msra.mxu0 0
      %388 = vmatprep.subr.bf16.mxu0 0
      %389 = vmatpush1.bf16.msra.mxu0 0
      %390 = vmatprep.subr.bf16.mxu0 0
      %391 = vmatpush1.bf16.msra.mxu0 0
      %392 = vmatprep.subr.bf16.mxu0 0
      %393 = vmatpush1.bf16.msra.mxu0 0
      %394 = vmatprep.mubr.bf16.mxu0 0
      %395 = vmatmul.mubr.bf16.gmra.mrb[0].mxu0 %v312
      %v396 = vpop.f32.mrb[0].mxu0
      %v397 = vadd.f32 %v306, %v396
      %v398 = vpop.f32.mrb[0].mxu0
      %v399 = vpop.f32.mrb[0].mxu0
      %v400 = vadd.f32 %v306, %v399
      %v401 = vpop.f32.mrb[0].mxu0
      %402 = vdwg.mxu0
      %v403 = vmax.f32 %v397, 0.0
      %v404 = vmax.f32 %v400, 0.0
      %v405 = vpack.c.bf16 %v404, %v403
      %v406 = vld [vmem:[%s3] sm:$0xf]
      %v407 = vld [vmem:[%s3 + $0x4] sm:$0xf]
      %v408 = vld [vmem:[%s3 + $0x8] sm:$0xf]
      %v409 = vld [vmem:[%s3 + $0xc] sm:$0xf]
      %v410 = vld [vmem:[%s3 + $0x10] sm:$0xf]
      %v411 = vld [vmem:[%s3 + $0x14] sm:$0xf]
      %v412 = vld [vmem:[%s3 + $0x18] sm:$0xf]
      %v413 = vld [vmem:[%s3 + $0x1c] sm:$0xf]
      %v414 = vld [vmem:[%s3 + $0x20] sm:$0xf]
      %v415 = vld [vmem:[%s3 + $0x24] sm:$0xf]
      %v416 = vld [vmem:[%s3 + $0x28] sm:$0xf]
      %v417 = vld [vmem:[%s3 + $0x2c] sm:$0xf]
      %v418 = vld [vmem:[%s3 + $0x30] sm:$0xf]
      %v419 = vld [vmem:[%s3 + $0x34] sm:$0xf]
      %v420 = vld [vmem:[%s3 + $0x38] sm:$0xf]
      %v421 = vld [vmem:[%s3 + $0x3c] sm:$0xf]
      %v422 = vld [vmem:[%s4] sm:$0x1]
      %v424 = vlaneseq
      %v425 = vshrl.u32 %v424, 7
      %v426 = vsub.s32 0, %v425
      %v427 = vrot.slane %v422, %v426
      %v445 = vunpack.c.l.b16 %v406
      %v446 = vunpack.c.l.b16 %v407
      %v447 = vunpack.c.l.b16 %v408
      %v448 = vunpack.c.l.b16 %v409
      %v449 = vunpack.c.l.b16 %v410
      %v450 = vunpack.c.l.b16 %v411
      %v451 = vunpack.c.l.b16 %v412
      %v452 = vunpack.c.l.b16 %v413
      %v453 = vunpack.c.l.b16 %v414
      %v454 = vunpack.c.l.b16 %v415
      %v455 = vunpack.c.l.b16 %v416
      %v456 = vunpack.c.l.b16 %v417
      %v457 = vunpack.c.l.b16 %v418
      %v458 = vunpack.c.l.b16 %v419
      %v459 = vunpack.c.l.b16 %v420
      %v460 = vunpack.c.l.b16 %v421
      %v461 = vpack.c.b16 %v446, %v445
      %v462 = vpack.c.b16 %v448, %v447
      %v463 = vpack.c.b16 %v450, %v449
      %v464 = vpack.c.b16 %v452, %v451
      %v465 = vpack.c.b16 %v454, %v453
      %v466 = vpack.c.b16 %v456, %v455
      %v467 = vpack.c.b16 %v458, %v457
      %v468 = vpack.c.b16 %v460, %v459
      %477 = vmatprep.subr.bf16.mxu0 0
      %478 = vmatpush1.bf16.msra.mxu0 %v461
      %479 = vmatprep.subr.bf16.mxu0 0
      %480 = vmatpush1.bf16.msra.mxu0 %v462
      %481 = vmatprep.subr.bf16.mxu0 0
      %482 = vmatpush1.bf16.msra.mxu0 %v463
      %483 = vmatprep.subr.bf16.mxu0 0
      %484 = vmatpush1.bf16.msra.mxu0 %v464
      %485 = vmatprep.subr.bf16.mxu0 0
      %486 = vmatpush1.bf16.msra.mxu0 %v465
      %487 = vmatprep.subr.bf16.mxu0 0
      %488 = vmatpush1.bf16.msra.mxu0 %v466
      %489 = vmatprep.subr.bf16.mxu0 0
      %490 = vmatpush1.bf16.msra.mxu0 %v467
      %491 = vmatprep.subr.bf16.mxu0 0
      %492 = vmatpush1.bf16.msra.mxu0 %v468
      %493 = vmatprep.subr.bf16.mxu0 0
      %494 = vmatpush1.bf16.msra.mxu0 0
      %495 = vmatprep.subr.bf16.mxu0 0
      %496 = vmatpush1.bf16.msra.mxu0 0
      %497 = vmatprep.subr.bf16.mxu0 0
      %498 = vmatpush1.bf16.msra.mxu0 0
      %499 = vmatprep.subr.bf16.mxu0 0
      %500 = vmatpush1.bf16.msra.mxu0 0
      %501 = vmatprep.subr.bf16.mxu0 0
      %502 = vmatpush1.bf16.msra.mxu0 0
      %503 = vmatprep.subr.bf16.mxu0 0
      %504 = vmatpush1.bf16.msra.mxu0 0
      %505 = vmatprep.subr.bf16.mxu0 0
      %506 = vmatpush1.bf16.msra.mxu0 0
      %507 = vmatprep.subr.bf16.mxu0 0
      %508 = vmatpush1.bf16.msra.mxu0 0
      %509 = vmatprep.mubr.bf16.mxu0 0
      %510 = vmatmul.mubr.bf16.gmra.mrb[0].mxu0 %v405
      %v511 = vpop.f32.mrb[0].mxu0
      %v512 = vadd.f32 %v427, %v511
      %v513 = vpop.f32.mrb[0].mxu0
      %v514 = vpop.f32.mrb[0].mxu0
      %v515 = vadd.f32 %v427, %v514
      %v516 = vpop.f32.mrb[0].mxu0
      %517 = vdwg.mxu0
      %v518 = vmax.f32 %v512, 0.0
      %v519 = vmax.f32 %v515, 0.0
      %v520 = vpack.c.bf16 %v519, %v518
      %v521 = vld [vmem:[%s5] sm:$0xf]
      %v522 = vld [vmem:[%s5 + $0x4] sm:$0xf]
      %v523 = vld [vmem:[%s5 + $0x8] sm:$0xf]
      %v524 = vld [vmem:[%s5 + $0xc] sm:$0xf]
      %v525 = vld [vmem:[%s5 + $0x10] sm:$0xf]
      %v526 = vld [vmem:[%s5 + $0x14] sm:$0xf]
      %v527 = vld [vmem:[%s5 + $0x18] sm:$0xf]
      %v528 = vld [vmem:[%s5 + $0x1c] sm:$0xf]
      %v529 = vld [vmem:[%s5 + $0x20] sm:$0xf]
      %v530 = vld [vmem:[%s5 + $0x24] sm:$0xf]
      %v531 = vld [vmem:[%s5 + $0x28] sm:$0xf]
      %v532 = vld [vmem:[%s5 + $0x2c] sm:$0xf]
      %v533 = vld [vmem:[%s5 + $0x30] sm:$0xf]
      %v534 = vld [vmem:[%s5 + $0x34] sm:$0xf]
      %v535 = vld [vmem:[%s5 + $0x38] sm:$0xf]
      %v536 = vld [vmem:[%s5 + $0x3c] sm:$0xf]
      %v537 = vld [vmem:[%s6] sm:$0x1]
      %v539 = vlaneseq
      %v540 = vshrl.u32 %v539, 7
      %v541 = vsub.s32 0, %v540
      %v542 = vrot.slane %v537, %v541
      %v560 = vunpack.c.l.b16 %v521
      %v561 = vunpack.c.l.b16 %v522
      %v562 = vunpack.c.l.b16 %v523
      %v563 = vunpack.c.l.b16 %v524
      %v564 = vunpack.c.l.b16 %v525
      %v565 = vunpack.c.l.b16 %v526
      %v566 = vunpack.c.l.b16 %v527
      %v567 = vunpack.c.l.b16 %v528
      %v568 = vunpack.c.l.b16 %v529
      %v569 = vunpack.c.l.b16 %v530
      %v570 = vunpack.c.l.b16 %v531
      %v571 = vunpack.c.l.b16 %v532
      %v572 = vunpack.c.l.b16 %v533
      %v573 = vunpack.c.l.b16 %v534
      %v574 = vunpack.c.l.b16 %v535
      %v575 = vunpack.c.l.b16 %v536
      %v576 = vpack.c.b16 %v561, %v560
      %v577 = vpack.c.b16 %v563, %v562
      %v578 = vpack.c.b16 %v565, %v564
      %v579 = vpack.c.b16 %v567, %v566
      %v580 = vpack.c.b16 %v569, %v568
      %v581 = vpack.c.b16 %v571, %v570
      %v582 = vpack.c.b16 %v573, %v572
      %v583 = vpack.c.b16 %v575, %v574
      %592 = vmatprep.subr.bf16.mxu0 0
      %593 = vmatpush1.bf16.msra.mxu0 %v576
      %594 = vmatprep.subr.bf16.mxu0 0
      %595 = vmatpush1.bf16.msra.mxu0 %v577
      %596 = vmatprep.subr.bf16.mxu0 0
      %597 = vmatpush1.bf16.msra.mxu0 %v578
      %598 = vmatprep.subr.bf16.mxu0 0
      %599 = vmatpush1.bf16.msra.mxu0 %v579
      %600 = vmatprep.subr.bf16.mxu0 0
      %601 = vmatpush1.bf16.msra.mxu0 %v580
      %602 = vmatprep.subr.bf16.mxu0 0
      %603 = vmatpush1.bf16.msra.mxu0 %v581
      %604 = vmatprep.subr.bf16.mxu0 0
      %605 = vmatpush1.bf16.msra.mxu0 %v582
      %606 = vmatprep.subr.bf16.mxu0 0
      %607 = vmatpush1.bf16.msra.mxu0 %v583
      %608 = vmatprep.subr.bf16.mxu0 0
      %609 = vmatpush1.bf16.msra.mxu0 0
      %610 = vmatprep.subr.bf16.mxu0 0
      %611 = vmatpush1.bf16.msra.mxu0 0
      %612 = vmatprep.subr.bf16.mxu0 0
      %613 = vmatpush1.bf16.msra.mxu0 0
      %614 = vmatprep.subr.bf16.mxu0 0
      %615 = vmatpush1.bf16.msra.mxu0 0
      %616 = vmatprep.subr.bf16.mxu0 0
      %617 = vmatpush1.bf16.msra.mxu0 0
      %618 = vmatprep.subr.bf16.mxu0 0
      %619 = vmatpush1.bf16.msra.mxu0 0
      %620 = vmatprep.subr.bf16.mxu0 0
      %621 = vmatpush1.bf16.msra.mxu0 0
      %622 = vmatprep.subr.bf16.mxu0 0
      %623 = vmatpush1.bf16.msra.mxu0 0
      %624 = vmatprep.mubr.bf16.mxu0 0
      %625 = vmatmul.mubr.bf16.gmra.mrb[0].mxu0 %v520
      %v626 = vpop.f32.mrb[0].mxu0
      %v627 = vadd.f32 %v542, %v626
      %v628 = vpop.f32.mrb[0].mxu0
      %v629 = vpop.f32.mrb[0].mxu0
      %v630 = vadd.f32 %v542, %v629
      %v631 = vpop.f32.mrb[0].mxu0
      %632 = vdwg.mxu0
      %633 = vst [vmem:[%s280] sm:$0xff] %v627
      %634 = vst [vmem:[%s280 + $0x8] sm:$0xff] %v630
      %s635 = smul.u32 2, %s18
      %p636 = scmp.lt.s32.totalorder %s635, 5
      %s637 = scalar_select %p636, %s635, 5
      %s638 = smul.addr %s637, 8
      %s639 = scalar_lea.vmem %s7, %s638
      // Predicated region
      $region49: #{neural_net_forward.1} parent=47 // pred_check
        %p640 = pneg %p188
      $region50: #{neural_net_forward.1} parent=47 // pred_check_branch
        %642 = sbr.rel (%p640) target = $region52
      $region51: #{neural_net_forward.1} parent=47 // pred_region
        %s643 = smul.u32 2, %s18
      $region52: #{neural_net_forward.1} parent=47 // pred_fallthru
        _
    $region48: #{neural_net_forward.1} parent=5 // pred_fallthru
      _
    %p644 = scmp.le.s32.totalorder 2, %s13
    // Predicated region
    $region53: #{neural_net_forward.1} parent=5 // pred_check
      %p645 = pneg %p644
    $region54: #{neural_net_forward.1} parent=5 // pred_check_branch
      %647 = sbr.rel (%p645) target = $region56
    $region55: #{neural_net_forward.1} parent=5 // pred_region
      %s648 = ssub.s32 %s13, 2
      // Predicated region
      $region57: #{neural_net_forward.1} parent=55 // pred_check
        %p649 = pneg %p194
      $region58: #{neural_net_forward.1} parent=55 // pred_check_branch
        %651 = sbr.rel (%p649) target = $region60
      $region59: #{neural_net_forward.1} parent=55 // pred_region
        %s652 = smul.u32 2, %s19
        %p653 = scmp.lt.s32.totalorder %s652, 5
        %s654 = scalar_select %p653, %s652, 5
        %s655 = smul.addr %s654, 8
        %s656 = scalar_lea.vmem %s7, %s655
      $region60: #{neural_net_forward.1} parent=55 // pred_fallthru
        _
    $region56: #{neural_net_forward.1} parent=5 // pred_fallthru
      _
  $region6: #{neural_net_forward.1} parent=0 // loop_footer
    %s17 = sadd.s32 1, %s13
  $region7: #{neural_net_forward.1} parent=0 // loop_footer_branch
    %12 = sbr.rel target = $region3
  $region8: #{neural_net_forward.1} parent=0 // loop_exit
    _

</llo_original>
